<compile_context>
chip_gen: v7x
topology: tpu7x:2x2x1
jax: 0.10.0
libtpu: 0.0.40
codegen_flags: <defaults>
</compile_context>

<pallas_src>
import math

import jax
import jax.numpy as jnp
from jax.experimental import pallas as pl
from jax.experimental.pallas import tpu as pltpu


# ----------------------------- kernel helpers ------------------------------

def _softplus(x):
    # matches torch.nn.functional.softplus(x, beta=1, threshold=20)
    return jnp.where(x > 20.0, x, jnp.log1p(jnp.exp(jnp.minimum(x, 20.0))))


def _make_vae_kernel(x_dim, y_dim, z_dim, h1, h2, batch, n_samples, layout):
    X, Z, H1, B, S = x_dim, z_dim, h1, batch, n_samples
    f32 = jnp.float32

    def kernel(xy_ref, eps_ref, blob_ref, probs_ref, loss_ref, kl_ref):
        def piece(name):
            # static slices of the packed parameter blob (sublane-aligned rows)
            r, nr, nc = layout[name]
            return blob_ref[r:r + nr, :nc]

        xy = xy_ref[...]                                   # (B, X+Y)
        x = xy[:, :X]
        y = xy[:, X:]

        # ---- encoder q(z|x,y): mu_net & logvar_net packed into one MLP ----
        h = jnp.maximum(jnp.dot(xy, piece("ew1"),
                                preferred_element_type=f32) + piece("eb1"),
                        0.0)                               # (B, 2H1)
        h = jnp.maximum(jnp.dot(h, piece("ew2"),
                                preferred_element_type=f32) + piece("eb2"),
                        0.0)                               # (B, 2H2)
        heads = jnp.dot(h, piece("ew3"),
                        preferred_element_type=f32) + piece("eb3")  # (B, 2Z)
        mu = heads[:, :Z]
        var = _softplus(heads[:, Z:])                      # GaussianMLP: softplus

        # ---- reparameterised sampling (broadcast over leading S axis) ----
        eps = eps_ref[...]                                 # (S, B, Z)
        sd = jnp.sqrt(var)
        z = mu[None] + eps * sd[None]                      # (S, B, Z)

        # ---- decoder p(y|x,z): x-projection once, broadcast over samples ----
        xproj = jnp.dot(x, piece("dw1x"),
                        preferred_element_type=f32) + piece("db1")   # (B, H1)
        zproj = jnp.dot(z.reshape(S * B, Z), piece("dw1z"),
                        preferred_element_type=f32)                   # (S*B, H1)
        h1v = jnp.maximum(xproj[None] + zproj.reshape(S, B, H1), 0.0)
        h2v = jnp.maximum(jnp.dot(h1v.reshape(S * B, H1), piece("dw2"),
                                  preferred_element_type=f32) + piece("db2"),
                          0.0)                                         # (S*B, H2)
        t = (jnp.dot(h2v, piece("dw3"),
                     preferred_element_type=f32) + piece("db3"))       # (S*B, Y)
        t = t.reshape(S, B, -1)

        # module's "logits" output = post-sigmoid outputs of sample 0
        probs_ref[...] = jax.nn.sigmoid(t[0])

        # Bernoulli log-likelihood straight from pre-sigmoid logits:
        #   y*log(sigmoid(t)) + (1-y)*log(1-sigmoid(t)) == y*t - softplus(t)
        log_p_total = jnp.sum(y[None] * t - _softplus(t))  # scalar

        # KL(q(z|x,y) || N(0,I)) averaged over batch, ELBO, loss
        kl = (-0.5 / B) * jnp.sum(1.0 + jnp.log(var) - mu * mu - var)
        elbo = log_p_total * (1.0 / (S * B)) - kl
        kl_ref[0] = kl
        loss_ref[0] = -elbo

    return kernel


# ------------------------------ pallas_call glue ----------------------------

def make_vae_forward(x_dim, y_dim, z_dim, h_dims, batch, n_samples, layout):
    h1, h2 = h_dims
    kernel = _make_vae_kernel(x_dim, y_dim, z_dim, h1, h2,
                              batch, n_samples, layout)
    B, Y, S = batch, y_dim, n_samples

    # rough cost hints so XLA can schedule around the (launch-bound) call
    flops = 2 * B * ((x_dim + y_dim) * 2 * h1 + (2 * h1) * (2 * h2)
                     + (2 * h2) * (2 * z_dim) + x_dim * h1)
    flops += 2 * S * B * (z_dim * h1 + h1 * h2 + h2 * Y)
    transcendentals = B * z_dim * 4 + S * B * Y * 2 + B * Y
    rows = sum(v[1] for v in layout.values())  # ~blob rows actually read

    def _vmem():
        return pl.BlockSpec(memory_space=pltpu.MemorySpace.VMEM)

    def _smem():
        return pl.BlockSpec(memory_space=pltpu.MemorySpace.SMEM)

    @jax.jit
    def forward(x, y, eps, blob):
        xy = jnp.concatenate([x, y], axis=1)               # (B, X+Y), ~free
        bytes_accessed = (xy.size + eps.size + blob.size + B * Y + 2) * 4
        probs0, loss, kl = pl.pallas_call(
            kernel,
            in_specs=[_vmem(), _vmem(), _vmem()],
            out_specs=(_vmem(), _smem(), _smem()),
            out_shape=(jax.ShapeDtypeStruct((B, Y), jnp.float32),
                       jax.ShapeDtypeStruct((1,), jnp.float32),
                       jax.ShapeDtypeStruct((1,), jnp.float32)),
            cost_estimate=pl.CostEstimate(
                flops=int(flops),
                transcendentals=int(transcendentals),
                bytes_accessed=int(bytes_accessed)),
        )(xy, eps, blob)
        return {"loss": loss[0], "kl": kl[0], "logits": probs0}

    return forward


# ------------------------------ parameter init ------------------------------

def _linear_params(key, fan_in, fan_out):
    kw, kb = jax.random.split(key)
    bound = 1.0 / math.sqrt(fan_in)                 # PyTorch nn.Linear default
    w = jax.random.uniform(kw, (fan_in, fan_out), jnp.float32, -bound, bound)
    b = jax.random.uniform(kb, (1, fan_out), jnp.float32, -bound, bound)
    return w, b


def _block_diag(a, b):
    ra, ca = a.shape
    rb, cb = b.shape
    top = jnp.concatenate([a, jnp.zeros((ra, cb), a.dtype)], axis=1)
    bot = jnp.concatenate([jnp.zeros((rb, ca), b.dtype), b], axis=1)
    return jnp.concatenate([top, bot], axis=0)


def _pack_params(pieces, lane_width):
    """Stack 2D pieces into one (rows, lane_width) blob; every piece starts on
    a sublane-aligned (multiple-of-8) row so in-kernel static slices are
    aligned loads.  Returns (blob, {name: (row_start, n_rows, n_cols)})."""
    layout = {}
    rows = []
    r = 0
    for name, arr in pieces:
        nr, nc = arr.shape
        pad_r = (-nr) % 8
        layout[name] = (r, nr, nc)
        rows.append(jnp.pad(arr, ((0, pad_r), (0, lane_width - nc))))
        r += nr + pad_r
    return jnp.concatenate(rows, axis=0), layout


def init_vae_params(key, x_dim, y_dim, z_dim, h_dims):
    # Assumed MLP(in, h_dims, out): Linear->ReLU->Linear->ReLU->Linear(->act)
    assert len(h_dims) == 2, "packed kernel assumes two hidden layers"
    h1, h2 = h_dims
    k = jax.random.split(key, 9)
    in_enc = x_dim + y_dim

    # q(z|x,y): mu_net and logvar_net
    mw1, mb1 = _linear_params(k[0], in_enc, h1)
    mw2, mb2 = _linear_params(k[1], h1, h2)
    mw3, mb3 = _linear_params(k[2], h2, z_dim)
    vw1, vb1 = _linear_params(k[3], in_enc, h1)
    vw2, vb2 = _linear_params(k[4], h1, h2)
    vw3, vb3 = _linear_params(k[5], h2, z_dim)

    # p(y|x,z)
    dw1, db1 = _linear_params(k[6], x_dim + z_dim, h1)
    dw2, db2 = _linear_params(k[7], h1, h2)
    dw3, db3 = _linear_params(k[8], h2, y_dim)

    # Pack mu/var nets into one width-2H MLP (shared layer-1 on xy, block-
    # diagonal layer-2, block-diagonal fused mu/var heads).  Decoder layer-1
    # is split into x- and z-parts so the x-projection is computed once.
    pieces = [
        ("ew1", jnp.concatenate([mw1, vw1], axis=1)),      # (x+y, 2h1)
        ("eb1", jnp.concatenate([mb1, vb1], axis=1)),      # (1, 2h1)
        ("ew2", _block_diag(mw2, vw2)),                    # (2h1, 2h2)
        ("eb2", jnp.concatenate([mb2, vb2], axis=1)),      # (1, 2h2)
        ("ew3", _block_diag(mw3, vw3)),                    # (2h2, 2z)
        ("eb3", jnp.concatenate([mb3, vb3], axis=1)),      # (1, 2z)
        ("dw1x", dw1[:x_dim]),                             # (x, h1)
        ("dw1z", dw1[x_dim:]),                             # (z, h1)
        ("db1", db1),                                      # (1, h1)
        ("dw2", dw2),                                      # (h1, h2)
        ("db2", db2),                                      # (1, h2)
        ("dw3", dw3),                                      # (h2, y)
        ("db3", db3),                                      # (1, y)
    ]
    lane_width = max(a.shape[1] for _, a in pieces)
    return _pack_params(pieces, lane_width)


# ----------------------------------- main -----------------------------------

if __name__ == "__main__":
    X_DIM, Y_DIM, Z_DIM = 16, 8, 8
    H_DIMS = (32, 32)
    N_SAMPLES = 4
    BATCH = 8

    key = jax.random.PRNGKey(0)
    k_param, k_x, k_y, k_eps = jax.random.split(key, 4)

    blob, layout = init_vae_params(k_param, X_DIM, Y_DIM, Z_DIM, H_DIMS)
    x = jax.random.normal(k_x, (BATCH, X_DIM), dtype=jnp.float32)
    y = (jax.random.uniform(k_y, (BATCH, Y_DIM)) > 0.5).astype(jnp.float32)
    # TODO(synk): torch.randn's RNG stream cannot be reproduced bit-exactly;
    # eps is drawn with jax.random.normal (same distribution, different bits).
    eps = jax.random.normal(k_eps, (N_SAMPLES, BATCH, Z_DIM), dtype=jnp.float32)

    forward = make_vae_forward(X_DIM, Y_DIM, Z_DIM, H_DIMS, BATCH, N_SAMPLES,
                               layout)
    out = jax.block_until_ready(forward(x, y, eps, blob))

    assert out["logits"].shape == (BATCH, Y_DIM)
    assert out["loss"].shape == () and out["kl"].shape == ()
    assert bool(jnp.isfinite(out["loss"])) and bool(jnp.isfinite(out["kl"]))
    print("KERNEL_OK")
</pallas_src>

<mosaic_0001>
module attributes {stable_mosaic.version = 11 : i64} {
  func.func @kernel(%arg0: memref<8x24xf32, #tpu.memory_space<vmem>>, %arg1: memref<4x8x8xf32, #tpu.memory_space<vmem>>, %arg2: memref<288x64xf32, #tpu.memory_space<vmem>>, %arg3: memref<8x8xf32, #tpu.memory_space<vmem>>, %arg4: memref<1xf32, #tpu.memory_space<smem>>, %arg5: memref<1xf32, #tpu.memory_space<smem>>) attributes {dimension_semantics = [], scalar_prefetch = 0 : i64, scratch_operands = 0 : i64, tpu.core_type = #tpu.core_type<tc>} {
    %c0 = arith.constant 0 : index
    %c0_0 = arith.constant 0 : index
    %0 = vector.load %arg0[%c0, %c0_0] : memref<8x24xf32, #tpu.memory_space<vmem>>, vector<8x24xf32>
    %1 = vector.extract_strided_slice %0 {offsets = [0, 0], sizes = [8, 16], strides = [1, 1]} : vector<8x24xf32> to vector<8x16xf32>
    %2 = vector.extract_strided_slice %0 {offsets = [0, 16], sizes = [8, 8], strides = [1, 1]} : vector<8x24xf32> to vector<8x8xf32>
    %c0_1 = arith.constant 0 : index
    %c0_2 = arith.constant 0 : index
    %3 = vector.load %arg2[%c0_1, %c0_2] : memref<288x64xf32, #tpu.memory_space<vmem>>, vector<24x64xf32>
    %cst = arith.constant dense<0.000000e+00> : vector<8x64xf32>
    %4 = tpu.matmul %0, %3, %cst {dimension_numbers = #tpu.dot_dimension_numbers<[1], [0], [0], [1], [0, 0, 1, 1], [], []>} : vector<8x24xf32>, vector<24x64xf32>, vector<8x64xf32> -> vector<8x64xf32>
    %c24 = arith.constant 24 : index
    %c0_3 = arith.constant 0 : index
    %5 = vector.load %arg2[%c24, %c0_3] : memref<288x64xf32, #tpu.memory_space<vmem>>, vector<1x64xf32>
    %6 = vector.broadcast %5 : vector<1x64xf32> to vector<8x64xf32>
    %7 = arith.addf %4, %6 : vector<8x64xf32>
    %cst_4 = arith.constant 0.000000e+00 : f32
    %8 = vector.broadcast %cst_4 : f32 to vector<8x64xf32>
    %9 = arith.maximumf %7, %8 : vector<8x64xf32>
    %c32 = arith.constant 32 : index
    %c0_5 = arith.constant 0 : index
    %10 = vector.load %arg2[%c32, %c0_5] : memref<288x64xf32, #tpu.memory_space<vmem>>, vector<64x64xf32>
    %cst_6 = arith.constant dense<0.000000e+00> : vector<8x64xf32>
    %11 = tpu.matmul %9, %10, %cst_6 {dimension_numbers = #tpu.dot_dimension_numbers<[1], [0], [0], [1], [0, 0, 1, 1], [], []>} : vector<8x64xf32>, vector<64x64xf32>, vector<8x64xf32> -> vector<8x64xf32>
    %c96 = arith.constant 96 : index
    %c0_7 = arith.constant 0 : index
    %12 = vector.load %arg2[%c96, %c0_7] : memref<288x64xf32, #tpu.memory_space<vmem>>, vector<1x64xf32>
    %13 = vector.broadcast %12 : vector<1x64xf32> to vector<8x64xf32>
    %14 = arith.addf %11, %13 : vector<8x64xf32>
    %cst_8 = arith.constant 0.000000e+00 : f32
    %15 = vector.broadcast %cst_8 : f32 to vector<8x64xf32>
    %16 = arith.maximumf %14, %15 : vector<8x64xf32>
    %c104 = arith.constant 104 : index
    %c0_9 = arith.constant 0 : index
    %17 = vector.load %arg2[%c104, %c0_9] : memref<288x64xf32, #tpu.memory_space<vmem>>, vector<64x16xf32>
    %cst_10 = arith.constant dense<0.000000e+00> : vector<8x16xf32>
    %18 = tpu.matmul %16, %17, %cst_10 {dimension_numbers = #tpu.dot_dimension_numbers<[1], [0], [0], [1], [0, 0, 1, 1], [], []>} : vector<8x64xf32>, vector<64x16xf32>, vector<8x16xf32> -> vector<8x16xf32>
    %c168 = arith.constant 168 : index
    %c0_11 = arith.constant 0 : index
    %19 = vector.load %arg2[%c168, %c0_11] : memref<288x64xf32, #tpu.memory_space<vmem>>, vector<1x16xf32>
    %20 = vector.broadcast %19 : vector<1x16xf32> to vector<8x16xf32>
    %21 = arith.addf %18, %20 : vector<8x16xf32>
    %22 = vector.extract_strided_slice %21 {offsets = [0, 0], sizes = [8, 8], strides = [1, 1]} : vector<8x16xf32> to vector<8x8xf32>
    %23 = vector.extract_strided_slice %21 {offsets = [0, 8], sizes = [8, 8], strides = [1, 1]} : vector<8x16xf32> to vector<8x8xf32>
    %cst_12 = arith.constant 2.000000e+01 : f32
    %24 = vector.broadcast %cst_12 : f32 to vector<8x8xf32>
    %25 = arith.cmpf ogt, %23, %24 : vector<8x8xf32>
    %cst_13 = arith.constant 2.000000e+01 : f32
    %26 = vector.broadcast %cst_13 : f32 to vector<8x8xf32>
    %27 = arith.minimumf %23, %26 : vector<8x8xf32>
    %28 = math.exp %27 : vector<8x8xf32>
    %29 = math.log1p %28 : vector<8x8xf32>
    %30 = arith.select %25, %23, %29 : vector<8x8xi1>, vector<8x8xf32>
    %c0_14 = arith.constant 0 : index
    %c0_15 = arith.constant 0 : index
    %c0_16 = arith.constant 0 : index
    %31 = vector.load %arg1[%c0_14, %c0_15, %c0_16] : memref<4x8x8xf32, #tpu.memory_space<vmem>>, vector<4x8x8xf32>
    %32 = math.sqrt %30 : vector<8x8xf32>
    %33 = vector.shape_cast %22 : vector<8x8xf32> to vector<1x8x8xf32>
    %34 = vector.shape_cast %32 : vector<8x8xf32> to vector<1x8x8xf32>
    %35 = vector.broadcast %34 : vector<1x8x8xf32> to vector<4x8x8xf32>
    %36 = arith.mulf %31, %35 : vector<4x8x8xf32>
    %37 = vector.broadcast %33 : vector<1x8x8xf32> to vector<4x8x8xf32>
    %38 = arith.addf %37, %36 : vector<4x8x8xf32>
    %c176 = arith.constant 176 : index
    %c0_17 = arith.constant 0 : index
    %39 = vector.load %arg2[%c176, %c0_17] : memref<288x64xf32, #tpu.memory_space<vmem>>, vector<16x32xf32>
    %cst_18 = arith.constant dense<0.000000e+00> : vector<8x32xf32>
    %40 = tpu.matmul %1, %39, %cst_18 {dimension_numbers = #tpu.dot_dimension_numbers<[1], [0], [0], [1], [0, 0, 1, 1], [], []>} : vector<8x16xf32>, vector<16x32xf32>, vector<8x32xf32> -> vector<8x32xf32>
    %c200 = arith.constant 200 : index
    %c0_19 = arith.constant 0 : index
    %41 = vector.load %arg2[%c200, %c0_19] : memref<288x64xf32, #tpu.memory_space<vmem>>, vector<1x32xf32>
    %42 = vector.broadcast %41 : vector<1x32xf32> to vector<8x32xf32>
    %43 = arith.addf %40, %42 : vector<8x32xf32>
    %44 = vector.shape_cast %38 : vector<4x8x8xf32> to vector<32x8xf32>
    %c192 = arith.constant 192 : index
    %c0_20 = arith.constant 0 : index
    %45 = vector.load %arg2[%c192, %c0_20] : memref<288x64xf32, #tpu.memory_space<vmem>>, vector<8x32xf32>
    %cst_21 = arith.constant dense<0.000000e+00> : vector<32x32xf32>
    %46 = tpu.matmul %44, %45, %cst_21 {dimension_numbers = #tpu.dot_dimension_numbers<[1], [0], [0], [1], [0, 0, 1, 1], [], []>} : vector<32x8xf32>, vector<8x32xf32>, vector<32x32xf32> -> vector<32x32xf32>
    %47 = vector.shape_cast %43 : vector<8x32xf32> to vector<1x8x32xf32>
    %48 = vector.shape_cast %46 : vector<32x32xf32> to vector<4x8x32xf32>
    %49 = vector.broadcast %47 : vector<1x8x32xf32> to vector<4x8x32xf32>
    %50 = arith.addf %49, %48 : vector<4x8x32xf32>
    %cst_22 = arith.constant 0.000000e+00 : f32
    %51 = vector.broadcast %cst_22 : f32 to vector<4x8x32xf32>
    %52 = arith.maximumf %50, %51 : vector<4x8x32xf32>
    %53 = vector.shape_cast %52 : vector<4x8x32xf32> to vector<32x32xf32>
    %c208 = arith.constant 208 : index
    %c0_23 = arith.constant 0 : index
    %54 = vector.load %arg2[%c208, %c0_23] : memref<288x64xf32, #tpu.memory_space<vmem>>, vector<32x32xf32>
    %cst_24 = arith.constant dense<0.000000e+00> : vector<32x32xf32>
    %55 = tpu.matmul %53, %54, %cst_24 {dimension_numbers = #tpu.dot_dimension_numbers<[1], [0], [0], [1], [0, 0, 1, 1], [], []>} : vector<32x32xf32>, vector<32x32xf32>, vector<32x32xf32> -> vector<32x32xf32>
    %c240 = arith.constant 240 : index
    %c0_25 = arith.constant 0 : index
    %56 = vector.load %arg2[%c240, %c0_25] : memref<288x64xf32, #tpu.memory_space<vmem>>, vector<1x32xf32>
    %57 = vector.broadcast %56 : vector<1x32xf32> to vector<32x32xf32>
    %58 = arith.addf %55, %57 : vector<32x32xf32>
    %cst_26 = arith.constant 0.000000e+00 : f32
    %59 = vector.broadcast %cst_26 : f32 to vector<32x32xf32>
    %60 = arith.maximumf %58, %59 : vector<32x32xf32>
    %c248 = arith.constant 248 : index
    %c0_27 = arith.constant 0 : index
    %61 = vector.load %arg2[%c248, %c0_27] : memref<288x64xf32, #tpu.memory_space<vmem>>, vector<32x8xf32>
    %cst_28 = arith.constant dense<0.000000e+00> : vector<32x8xf32>
    %62 = tpu.matmul %60, %61, %cst_28 {dimension_numbers = #tpu.dot_dimension_numbers<[1], [0], [0], [1], [0, 0, 1, 1], [], []>} : vector<32x32xf32>, vector<32x8xf32>, vector<32x8xf32> -> vector<32x8xf32>
    %c280 = arith.constant 280 : index
    %c0_29 = arith.constant 0 : index
    %63 = vector.load %arg2[%c280, %c0_29] : memref<288x64xf32, #tpu.memory_space<vmem>>, vector<1x8xf32>
    %64 = vector.broadcast %63 : vector<1x8xf32> to vector<32x8xf32>
    %65 = arith.addf %62, %64 : vector<32x8xf32>
    %66 = vector.shape_cast %65 : vector<32x8xf32> to vector<4x8x8xf32>
    %67 = vector.extract_strided_slice %66 {offsets = [0, 0, 0], sizes = [1, 8, 8], strides = [1, 1, 1]} : vector<4x8x8xf32> to vector<1x8x8xf32>
    %68 = vector.shape_cast %67 : vector<1x8x8xf32> to vector<8x8xf32>
    %69 = arith.negf %68 : vector<8x8xf32>
    %70 = math.exp %69 : vector<8x8xf32>
    %cst_30 = arith.constant 1.000000e+00 : f32
    %71 = vector.broadcast %cst_30 : f32 to vector<8x8xf32>
    %72 = arith.addf %71, %70 : vector<8x8xf32>
    %73 = arith.divf %71, %72 : vector<8x8xf32>
    %c0_31 = arith.constant 0 : index
    %c0_32 = arith.constant 0 : index
    %74 = vector.load %arg3[%c0_31, %c0_32] : memref<8x8xf32, #tpu.memory_space<vmem>>, vector<8x8xf32>
    tpu.vector_store %arg3[%c0_31, %c0_32], %73 {strides = array<i32>} : memref<8x8xf32, #tpu.memory_space<vmem>>, vector<8x8xf32>,
    %75 = vector.shape_cast %2 : vector<8x8xf32> to vector<1x8x8xf32>
    %76 = vector.broadcast %75 : vector<1x8x8xf32> to vector<4x8x8xf32>
    %77 = arith.mulf %76, %66 : vector<4x8x8xf32>
    %cst_33 = arith.constant 2.000000e+01 : f32
    %78 = vector.broadcast %cst_33 : f32 to vector<4x8x8xf32>
    %79 = arith.cmpf ogt, %66, %78 : vector<4x8x8xf32>
    %cst_34 = arith.constant 2.000000e+01 : f32
    %80 = vector.broadcast %cst_34 : f32 to vector<4x8x8xf32>
    %81 = arith.minimumf %66, %80 : vector<4x8x8xf32>
    %82 = math.exp %81 : vector<4x8x8xf32>
    %83 = math.log1p %82 : vector<4x8x8xf32>
    %84 = arith.select %79, %66, %83 : vector<4x8x8xi1>, vector<4x8x8xf32>
    %85 = arith.subf %77, %84 : vector<4x8x8xf32>
    %86 = vector.shape_cast %85 : vector<4x8x8xf32> to vector<1x4x8x8xf32>
    %cst_35 = arith.constant dense<0.000000e+00> : vector<1xf32>
    %87 = vector.multi_reduction <add>, %86, %cst_35 [1, 2, 3] : vector<1x4x8x8xf32> to vector<1xf32>
    %88 = vector.shape_cast %87 : vector<1xf32> to vector<1x1x1x1xf32>
    %89 = vector.extract %88[0, 0, 0, 0] : f32 from vector<1x1x1x1xf32>
    %90 = math.log %30 : vector<8x8xf32>
    %cst_36 = arith.constant 1.000000e+00 : f32
    %91 = vector.broadcast %cst_36 : f32 to vector<8x8xf32>
    %92 = arith.addf %91, %90 : vector<8x8xf32>
    %93 = arith.mulf %22, %22 : vector<8x8xf32>
    %94 = arith.subf %92, %93 : vector<8x8xf32>
    %95 = arith.subf %94, %30 : vector<8x8xf32>
    %96 = vector.shape_cast %95 : vector<8x8xf32> to vector<1x8x8xf32>
    %cst_37 = arith.constant dense<0.000000e+00> : vector<1xf32>
    %97 = vector.multi_reduction <add>, %96, %cst_37 [1, 2] : vector<1x8x8xf32> to vector<1xf32>
    %98 = vector.shape_cast %97 : vector<1xf32> to vector<1x1x1xf32>
    %99 = vector.extract %98[0, 0, 0] : f32 from vector<1x1x1xf32>
    %cst_38 = arith.constant -6.250000e-02 : f32
    %100 = arith.mulf %cst_38, %99 : f32
    %cst_39 = arith.constant 3.125000e-02 : f32
    %101 = arith.mulf %89, %cst_39 : f32
    %102 = arith.subf %101, %100 : f32
    %c0_40 = arith.constant 0 : index
    %103 = memref.load %arg5[%c0_40] : memref<1xf32, #tpu.memory_space<smem>>
    memref.store %100, %arg5[%c0_40] : memref<1xf32, #tpu.memory_space<smem>>
    %cst_41 = arith.constant 0.000000e+00 : f32
    %104 = arith.subf %cst_41, %102 : f32
    %c0_42 = arith.constant 0 : index
    %105 = memref.load %arg4[%c0_42] : memref<1xf32, #tpu.memory_space<smem>>
    memref.store %104, %arg4[%c0_42] : memref<1xf32, #tpu.memory_space<smem>>
    return
  }
}

</mosaic_0001>

<llo_original>
// kernel: forward.1
$region0: #{forward.1}
  #allocation0 [shape = 'u32[]', space=smem, size = 0x4, offset = 0x4, fixed_abs, tag = 'smem constant byte address 0x4 - core index']
  #allocation1 [shape = 'u32[144,128]{1,0:T(1,128)}', space=vmem, size = 0x12000, scoped, tag = 'internal scratch']
  %s0 = inlined_call_operand.vmem [shape: f32[8,24], index: 0, kind: input, shape index: {}]
  %s1 = inlined_call_operand.vmem [shape: f32[4,8,8], index: 1, kind: input, shape index: {}]
  %s2 = inlined_call_operand.vmem [shape: f32[288,64], index: 2, kind: input, shape index: {}]
  %s3 = inlined_call_operand.hbm [shape: f32[8,8], index: 3, kind: output, shape index: {0}]
  %s4 = inlined_call_operand.hbm [shape: f32[1], index: 4, kind: output, shape index: {1}]
  %s5 = inlined_call_operand.hbm [shape: f32[1], index: 5, kind: output, shape index: {2}]
  %6 = xla_tuple %s3, %s4, %s5
  %s7 = sld [smem:[#allocation0]]
  $region38: #{forward.1} parent=0
    _
  %s9 = ssub.s32 1, %s7
  %s10 = scalar_select 0, %s9, %s7
  $region1: #{forward.1} parent=0
    #allocation2 [shape = 'u8[4096]{0}', space=vmem, size = 0x1000, scoped, tag = 'output window, operand 0, single buffered']
    #allocation3 [shape = 's32[1]{0}', space=sflag, size = 0x4, scoped, tag = 'scoped memory for forward.1']
    #allocation4 [shape = 's32[1]{0}', space=sflag, size = 0x4, scoped, tag = 'scoped memory for forward.1']
    #allocation5 [shape = 'u8[512]{0}', space=smem, size = 0x200, scoped, tag = 'output window, operand 1, single buffered']
    #allocation6 [shape = 'u8[512]{0}', space=smem, size = 0x200, scoped, tag = 'output window, operand 2, single buffered']
    #allocation7 [shape = 's32[1]{0}', space=sflag, size = 0x4, scoped, tag = 'scoped memory for forward.1']
    %11 = vsyncpa [#allocation3], 0
    %12 = vsyncpa [#allocation4], 0
    %13 = vsyncpa [#allocation7], 0
    // Predicated region
    $region2: #{forward.1} parent=1 // pred_check
      _
    $region3: #{forward.1} parent=1 // pred_check_branch
      %15 = sbr.rel (0) target = $region5
    $region4: #{forward.1} parent=1 // pred_region
      _
    $region5: #{forward.1} parent=1 // pred_fallthru
      _
    // Predicated region
    $region6: #{forward.1} parent=1 // pred_check
      _
    $region7: #{forward.1} parent=1 // pred_check_branch
      %17 = sbr.rel (0) target = $region9
    $region8: #{forward.1} parent=1 // pred_region
      _
    $region9: #{forward.1} parent=1 // pred_fallthru
      _
    // Predicated region
    $region10: #{forward.1} parent=1 // pred_check
      _
    $region11: #{forward.1} parent=1 // pred_check_branch
      %19 = sbr.rel (0) target = $region13
    $region12: #{forward.1} parent=1 // pred_region
      _
    $region13: #{forward.1} parent=1 // pred_fallthru
      _
    %v20 = vld [vmem:[%s0] sm:$0xff]
    %v21 = vld [vmem:[%s2] sm:$0xff]
    %v22 = vld [vmem:[%s2 + $0x8] sm:$0xff]
    %v23 = vld [vmem:[%s2 + $0x10] sm:$0xff]
    %v24 = vld [vmem:[%s2 + $0x18] sm:$0x1]
    %v25 = vlaneseq
    %v26 = vshrl.u32 %v25, 7
    %v27 = vsub.s32 0, %v26
    %v28 = vrot.slane %v24, %v27
    %vm29 = vcmask 195584
    %v31 = vsel %vm29, %v20, 0
    %33 = vmatprep.subr.mxu0 0.0
    %34 = vmatpush1.msra.mxu0 %v21
    %35 = vmatprep.subr.mxu0 0.0
    %36 = vmatpush1.msra.mxu0 %v22
    %37 = vmatprep.subr.mxu0 0.0
    %38 = vmatpush1.msra.mxu0 %v23
    %39 = vmatprep.subr.mxu0 0.0
    %40 = vmatpush1.msra.mxu0 0.0
    %41 = vmatprep.subr.mxu0 0.0
    %42 = vmatpush1.msra.mxu0 0.0
    %43 = vmatprep.subr.mxu0 0.0
    %44 = vmatpush1.msra.mxu0 0.0
    %45 = vmatprep.subr.mxu0 0.0
    %46 = vmatpush1.msra.mxu0 0.0
    %47 = vmatprep.subr.mxu0 0.0
    %48 = vmatpush1.msra.mxu0 0.0
    %49 = vmatprep.subr.mxu0 0.0
    %50 = vmatpush1.msra.mxu0 0.0
    %51 = vmatprep.subr.mxu0 0.0
    %52 = vmatpush1.msra.mxu0 0.0
    %53 = vmatprep.subr.mxu0 0.0
    %54 = vmatpush1.msra.mxu0 0.0
    %55 = vmatprep.subr.mxu0 0.0
    %56 = vmatpush1.msra.mxu0 0.0
    %57 = vmatprep.subr.mxu0 0.0
    %58 = vmatpush1.msra.mxu0 0.0
    %59 = vmatprep.subr.mxu0 0.0
    %60 = vmatpush1.msra.mxu0 0.0
    %61 = vmatprep.subr.mxu0 0.0
    %62 = vmatpush1.msra.mxu0 0.0
    %63 = vmatprep.subr.mxu0 0.0
    %64 = vmatpush1.msra.mxu0 0.0
    %65 = vmatprep.subr.mxu0 0.0
    %66 = vmatpush1.msra.mxu0 0.0
    %67 = vmatprep.subr.mxu0 0.0
    %68 = vmatpush1.msra.mxu0 0.0
    %69 = vmatprep.subr.mxu0 0.0
    %70 = vmatpush1.msra.mxu0 0.0
    %71 = vmatprep.subr.mxu0 0.0
    %72 = vmatpush1.msra.mxu0 0.0
    %73 = vmatprep.subr.mxu0 0.0
    %74 = vmatpush1.msra.mxu0 0.0
    %75 = vmatprep.subr.mxu0 0.0
    %76 = vmatpush1.msra.mxu0 0.0
    %77 = vmatprep.subr.mxu0 0.0
    %78 = vmatpush1.msra.mxu0 0.0
    %79 = vmatprep.subr.mxu0 0.0
    %80 = vmatpush1.msra.mxu0 0.0
    %81 = vmatprep.subr.mxu0 0.0
    %82 = vmatpush1.msra.mxu0 0.0
    %83 = vmatprep.subr.mxu0 0.0
    %84 = vmatpush1.msra.mxu0 0.0
    %85 = vmatprep.subr.mxu0 0.0
    %86 = vmatpush1.msra.mxu0 0.0
    %87 = vmatprep.subr.mxu0 0.0
    %88 = vmatpush1.msra.mxu0 0.0
    %89 = vmatprep.subr.mxu0 0.0
    %90 = vmatpush1.msra.mxu0 0.0
    %91 = vmatprep.subr.mxu0 0.0
    %92 = vmatpush1.msra.mxu0 0.0
    %93 = vmatprep.subr.mxu0 0.0
    %94 = vmatpush1.msra.mxu0 0.0
    %95 = vmatprep.subr.mxu0 0.0
    %96 = vmatpush1.msra.mxu0 0.0
    %97 = vmatprep.mubr.f32.mxu0 0.0
    %98 = vmatmul.mubr.f32.gmra.mrb[0].mxu0 %v31
    %v99 = vpop.f32.mrb[0].mxu0
    %v100 = vadd.f32 %v28, %v99
    %v101 = vpop.f32.mrb[0].mxu0
    %102 = vdwg.mxu0
    %v103 = vmax.f32 %v100, 0.0
    %v104 = vld [vmem:[%s2 + $0x20] sm:$0xff]
    %v105 = vld [vmem:[%s2 + $0x28] sm:$0xff]
    %v106 = vld [vmem:[%s2 + $0x30] sm:$0xff]
    %v107 = vld [vmem:[%s2 + $0x38] sm:$0xff]
    %v108 = vld [vmem:[%s2 + $0x40] sm:$0xff]
    %v109 = vld [vmem:[%s2 + $0x48] sm:$0xff]
    %v110 = vld [vmem:[%s2 + $0x50] sm:$0xff]
    %v111 = vld [vmem:[%s2 + $0x58] sm:$0xff]
    %v112 = vld [vmem:[%s2 + $0x60] sm:$0x1]
    %v113 = vlaneseq
    %v114 = vshrl.u32 %v113, 7
    %v115 = vsub.s32 0, %v114
    %v116 = vrot.slane %v112, %v115
    %vm117 = vcmask 523264
    %v119 = vsel %vm117, %v103, 0
    %121 = vmatprep.subr.mxu0 0.0
    %122 = vmatpush1.msra.mxu0 %v104
    %123 = vmatprep.subr.mxu0 0.0
    %124 = vmatpush1.msra.mxu0 %v105
    %125 = vmatprep.subr.mxu0 0.0
    %126 = vmatpush1.msra.mxu0 %v106
    %127 = vmatprep.subr.mxu0 0.0
    %128 = vmatpush1.msra.mxu0 %v107
    %129 = vmatprep.subr.mxu0 0.0
    %130 = vmatpush1.msra.mxu0 %v108
    %131 = vmatprep.subr.mxu0 0.0
    %132 = vmatpush1.msra.mxu0 %v109
    %133 = vmatprep.subr.mxu0 0.0
    %134 = vmatpush1.msra.mxu0 %v110
    %135 = vmatprep.subr.mxu0 0.0
    %136 = vmatpush1.msra.mxu0 %v111
    %137 = vmatprep.subr.mxu0 0.0
    %138 = vmatpush1.msra.mxu0 0.0
    %139 = vmatprep.subr.mxu0 0.0
    %140 = vmatpush1.msra.mxu0 0.0
    %141 = vmatprep.subr.mxu0 0.0
    %142 = vmatpush1.msra.mxu0 0.0
    %143 = vmatprep.subr.mxu0 0.0
    %144 = vmatpush1.msra.mxu0 0.0
    %145 = vmatprep.subr.mxu0 0.0
    %146 = vmatpush1.msra.mxu0 0.0
    %147 = vmatprep.subr.mxu0 0.0
    %148 = vmatpush1.msra.mxu0 0.0
    %149 = vmatprep.subr.mxu0 0.0
    %150 = vmatpush1.msra.mxu0 0.0
    %151 = vmatprep.subr.mxu0 0.0
    %152 = vmatpush1.msra.mxu0 0.0
    %153 = vmatprep.subr.mxu0 0.0
    %154 = vmatpush1.msra.mxu0 0.0
    %155 = vmatprep.subr.mxu0 0.0
    %156 = vmatpush1.msra.mxu0 0.0
    %157 = vmatprep.subr.mxu0 0.0
    %158 = vmatpush1.msra.mxu0 0.0
    %159 = vmatprep.subr.mxu0 0.0
    %160 = vmatpush1.msra.mxu0 0.0
    %161 = vmatprep.subr.mxu0 0.0
    %162 = vmatpush1.msra.mxu0 0.0
    %163 = vmatprep.subr.mxu0 0.0
    %164 = vmatpush1.msra.mxu0 0.0
    %165 = vmatprep.subr.mxu0 0.0
    %166 = vmatpush1.msra.mxu0 0.0
    %167 = vmatprep.subr.mxu0 0.0
    %168 = vmatpush1.msra.mxu0 0.0
    %169 = vmatprep.subr.mxu0 0.0
    %170 = vmatpush1.msra.mxu0 0.0
    %171 = vmatprep.subr.mxu0 0.0
    %172 = vmatpush1.msra.mxu0 0.0
    %173 = vmatprep.subr.mxu0 0.0
    %174 = vmatpush1.msra.mxu0 0.0
    %175 = vmatprep.subr.mxu0 0.0
    %176 = vmatpush1.msra.mxu0 0.0
    %177 = vmatprep.subr.mxu0 0.0
    %178 = vmatpush1.msra.mxu0 0.0
    %179 = vmatprep.subr.mxu0 0.0
    %180 = vmatpush1.msra.mxu0 0.0
    %181 = vmatprep.subr.mxu0 0.0
    %182 = vmatpush1.msra.mxu0 0.0
    %183 = vmatprep.subr.mxu0 0.0
    %184 = vmatpush1.msra.mxu0 0.0
    %185 = vmatprep.mubr.f32.mxu0 0.0
    %186 = vmatmul.mubr.f32.gmra.mrb[0].mxu0 %v119
    %v187 = vpop.f32.mrb[0].mxu0
    %v188 = vadd.f32 %v116, %v187
    %v189 = vpop.f32.mrb[0].mxu0
    %190 = vdwg.mxu0
    %v191 = vmax.f32 %v188, 0.0
    %v192 = vld [vmem:[%s2 + $0x68] sm:$0xff]
    %v193 = vld [vmem:[%s2 + $0x70] sm:$0xff]
    %v194 = vld [vmem:[%s2 + $0x78] sm:$0xff]
    %v195 = vld [vmem:[%s2 + $0x80] sm:$0xff]
    %v196 = vld [vmem:[%s2 + $0x88] sm:$0xff]
    %v197 = vld [vmem:[%s2 + $0x90] sm:$0xff]
    %v198 = vld [vmem:[%s2 + $0x98] sm:$0xff]
    %v199 = vld [vmem:[%s2 + $0xa0] sm:$0xff]
    %v200 = vld [vmem:[%s2 + $0xa8] sm:$0x1]
    %v201 = vlaneseq
    %v202 = vshrl.u32 %v201, 7
    %v203 = vsub.s32 0, %v202
    %v204 = vrot.slane %v200, %v203
    %v206 = vsel %vm117, %v191, 0
    %208 = vmatprep.subr.mxu0 0.0
    %209 = vmatpush1.msra.mxu0 %v192
    %210 = vmatprep.subr.mxu0 0.0
    %211 = vmatpush1.msra.mxu0 %v193
    %212 = vmatprep.subr.mxu0 0.0
    %213 = vmatpush1.msra.mxu0 %v194
    %214 = vmatprep.subr.mxu0 0.0
    %215 = vmatpush1.msra.mxu0 %v195
    %216 = vmatprep.subr.mxu0 0.0
    %217 = vmatpush1.msra.mxu0 %v196
    %218 = vmatprep.subr.mxu0 0.0
    %219 = vmatpush1.msra.mxu0 %v197
    %220 = vmatprep.subr.mxu0 0.0
    %221 = vmatpush1.msra.mxu0 %v198
    %222 = vmatprep.subr.mxu0 0.0
    %223 = vmatpush1.msra.mxu0 %v199
    %224 = vmatprep.subr.mxu0 0.0
    %225 = vmatpush1.msra.mxu0 0.0
    %226 = vmatprep.subr.mxu0 0.0
    %227 = vmatpush1.msra.mxu0 0.0
    %228 = vmatprep.subr.mxu0 0.0
    %229 = vmatpush1.msra.mxu0 0.0
    %230 = vmatprep.subr.mxu0 0.0
    %231 = vmatpush1.msra.mxu0 0.0
    %232 = vmatprep.subr.mxu0 0.0
    %233 = vmatpush1.msra.mxu0 0.0
    %234 = vmatprep.subr.mxu0 0.0
    %235 = vmatpush1.msra.mxu0 0.0
    %236 = vmatprep.subr.mxu0 0.0
    %237 = vmatpush1.msra.mxu0 0.0
    %238 = vmatprep.subr.mxu0 0.0
    %239 = vmatpush1.msra.mxu0 0.0
    %240 = vmatprep.subr.mxu0 0.0
    %241 = vmatpush1.msra.mxu0 0.0
    %242 = vmatprep.subr.mxu0 0.0
    %243 = vmatpush1.msra.mxu0 0.0
    %244 = vmatprep.subr.mxu0 0.0
    %245 = vmatpush1.msra.mxu0 0.0
    %246 = vmatprep.subr.mxu0 0.0
    %247 = vmatpush1.msra.mxu0 0.0
    %248 = vmatprep.subr.mxu0 0.0
    %249 = vmatpush1.msra.mxu0 0.0
    %250 = vmatprep.subr.mxu0 0.0
    %251 = vmatpush1.msra.mxu0 0.0
    %252 = vmatprep.subr.mxu0 0.0
    %253 = vmatpush1.msra.mxu0 0.0
    %254 = vmatprep.subr.mxu0 0.0
    %255 = vmatpush1.msra.mxu0 0.0
    %256 = vmatprep.subr.mxu0 0.0
    %257 = vmatpush1.msra.mxu0 0.0
    %258 = vmatprep.subr.mxu0 0.0
    %259 = vmatpush1.msra.mxu0 0.0
    %260 = vmatprep.subr.mxu0 0.0
    %261 = vmatpush1.msra.mxu0 0.0
    %262 = vmatprep.subr.mxu0 0.0
    %263 = vmatpush1.msra.mxu0 0.0
    %264 = vmatprep.subr.mxu0 0.0
    %265 = vmatpush1.msra.mxu0 0.0
    %266 = vmatprep.subr.mxu0 0.0
    %267 = vmatpush1.msra.mxu0 0.0
    %268 = vmatprep.subr.mxu0 0.0
    %269 = vmatpush1.msra.mxu0 0.0
    %270 = vmatprep.subr.mxu0 0.0
    %271 = vmatpush1.msra.mxu0 0.0
    %272 = vmatprep.mubr.f32.mxu0 0.0
    %273 = vmatmul.mubr.f32.gmra.mrb[0].mxu0 %v206
    %v274 = vpop.f32.mrb[0].mxu0
    %v275 = vadd.f32 %v204, %v274
    %v276 = vpop.f32.mrb[0].mxu0
    %277 = vdwg.mxu0
    %vm278 = vcmp.gt.f32.partialorder %v275, 20.0
    %v279 = vmin.f32 %v275, 20.0
    %v280 = vmul.f32 %v279, 1.442695
    %v281 = vpow.pop %v280
    %v282 = vadd.f32 %v281, 1.0
    %v283 = vlog2.pop %v282
    %v284 = vmul.f32 %v283, 0.6931472
    %v285 = vmul.f32 -0.5, %v281
    %v286 = vadd.f32 %v285, 1.0
    %v287 = vmul.f32 %v286, %v281
    %v288 = vand.u32 2147483647, %v281
    %vm289 = vcmp.lt.f32.partialorder %v288, 0.0004427343
    %v290 = vsel %vm289, %v287, %v284
    %v291 = vsel %vm278, %v275, %v290
    %v292 = vld [vmem:[%s1] sm:$0xff]
    %v293 = vld [vmem:[%s1 + $0x8] sm:$0xff]
    %v294 = vld [vmem:[%s1 + $0x10] sm:$0xff]
    %v295 = vld [vmem:[%s1 + $0x18] sm:$0xff]
    %v296 = vrsqrt.pop %v291
    %v297 = vmul.f32 %v291, %v296
    %vm298 = vcmp.eq.f32.partialorder %v291, inf
    %v299 = vsel %vm298, %v291, %v297
    %vm300 = vcmp.eq.f32.partialorder %v291, 0.0
    %v301 = vand.u32 %v291, 2147483648
    %v302 = vsel %vm300, %v301, %v299
    %304 = vrot.lane.b32.xlu0 %v302, 120
    %v305 = vpop.permute.xlu0 %304
    %v307 = vmul.f32 %v292, %v305
    %v308 = vmul.f32 %v293, %v305
    %v309 = vmul.f32 %v294, %v305
    %v310 = vmul.f32 %v295, %v305
    %v311 = vadd.f32 %v275, %v307
    %v312 = vadd.f32 %v275, %v308
    %v313 = vadd.f32 %v275, %v309
    %v314 = vadd.f32 %v275, %v310
    %v315 = vld [vmem:[%s2 + $0xb0] sm:$0xff]
    %v316 = vld [vmem:[%s2 + $0xb8] sm:$0xff]
    %v317 = vld [vmem:[%s2 + $0xc8] sm:$0x1]
    %v318 = vlaneseq
    %v319 = vshrl.u32 %v318, 7
    %v320 = vsub.s32 0, %v319
    %v321 = vrot.slane %v317, %v320
    %vm322 = vcmask 130048
    %v323 = vsel %vm322, %v20, 0
    %325 = vmatprep.subr.mxu0 0.0
    %326 = vmatpush1.msra.mxu0 %v315
    %327 = vmatprep.subr.mxu0 0.0
    %328 = vmatpush1.msra.mxu0 %v316
    %329 = vmatprep.subr.mxu0 0.0
    %330 = vmatpush1.msra.mxu0 0.0
    %331 = vmatprep.subr.mxu0 0.0
    %332 = vmatpush1.msra.mxu0 0.0
    %333 = vmatprep.subr.mxu0 0.0
    %334 = vmatpush1.msra.mxu0 0.0
    %335 = vmatprep.subr.mxu0 0.0
    %336 = vmatpush1.msra.mxu0 0.0
    %337 = vmatprep.subr.mxu0 0.0
    %338 = vmatpush1.msra.mxu0 0.0
    %339 = vmatprep.subr.mxu0 0.0
    %340 = vmatpush1.msra.mxu0 0.0
    %341 = vmatprep.subr.mxu0 0.0
    %342 = vmatpush1.msra.mxu0 0.0
    %343 = vmatprep.subr.mxu0 0.0
    %344 = vmatpush1.msra.mxu0 0.0
    %345 = vmatprep.subr.mxu0 0.0
    %346 = vmatpush1.msra.mxu0 0.0
    %347 = vmatprep.subr.mxu0 0.0
    %348 = vmatpush1.msra.mxu0 0.0
    %349 = vmatprep.subr.mxu0 0.0
    %350 = vmatpush1.msra.mxu0 0.0
    %351 = vmatprep.subr.mxu0 0.0
    %352 = vmatpush1.msra.mxu0 0.0
    %353 = vmatprep.subr.mxu0 0.0
    %354 = vmatpush1.msra.mxu0 0.0
    %355 = vmatprep.subr.mxu0 0.0
    %356 = vmatpush1.msra.mxu0 0.0
    %357 = vmatprep.subr.mxu0 0.0
    %358 = vmatpush1.msra.mxu0 0.0
    %359 = vmatprep.subr.mxu0 0.0
    %360 = vmatpush1.msra.mxu0 0.0
    %361 = vmatprep.subr.mxu0 0.0
    %362 = vmatpush1.msra.mxu0 0.0
    %363 = vmatprep.subr.mxu0 0.0
    %364 = vmatpush1.msra.mxu0 0.0
    %365 = vmatprep.subr.mxu0 0.0
    %366 = vmatpush1.msra.mxu0 0.0
    %367 = vmatprep.subr.mxu0 0.0
    %368 = vmatpush1.msra.mxu0 0.0
    %369 = vmatprep.subr.mxu0 0.0
    %370 = vmatpush1.msra.mxu0 0.0
    %371 = vmatprep.subr.mxu0 0.0
    %372 = vmatpush1.msra.mxu0 0.0
    %373 = vmatprep.subr.mxu0 0.0
    %374 = vmatpush1.msra.mxu0 0.0
    %375 = vmatprep.subr.mxu0 0.0
    %376 = vmatpush1.msra.mxu0 0.0
    %377 = vmatprep.subr.mxu0 0.0
    %378 = vmatpush1.msra.mxu0 0.0
    %379 = vmatprep.subr.mxu0 0.0
    %380 = vmatpush1.msra.mxu0 0.0
    %381 = vmatprep.subr.mxu0 0.0
    %382 = vmatpush1.msra.mxu0 0.0
    %383 = vmatprep.subr.mxu0 0.0
    %384 = vmatpush1.msra.mxu0 0.0
    %385 = vmatprep.subr.mxu0 0.0
    %386 = vmatpush1.msra.mxu0 0.0
    %387 = vmatprep.subr.mxu0 0.0
    %388 = vmatpush1.msra.mxu0 0.0
    %389 = vmatprep.mubr.f32.mxu0 0.0
    %390 = vmatmul.mubr.f32.gmra.mrb[0].mxu0 %v323
    %v391 = vpop.f32.mrb[0].mxu0
    %v392 = vadd.f32 %v321, %v391
    %v393 = vpop.f32.mrb[0].mxu0
    %394 = vdwg.mxu0
    %v395 = vld [vmem:[%s2 + $0xc0] sm:$0xff]
    %vm396 = vcmask 64512
    %v398 = vsel %vm396, %v311, 0
    %v401 = vsel %vm396, %v312, 0
    %v404 = vsel %vm396, %v313, 0
    %v407 = vsel %vm396, %v314, 0
    %409 = vmatprep.subr.mxu0 0.0
    %410 = vmatpush1.msra.mxu0 %v395
    %411 = vmatprep.subr.mxu0 0.0
    %412 = vmatpush1.msra.mxu0 0.0
    %413 = vmatprep.subr.mxu0 0.0
    %414 = vmatpush1.msra.mxu0 0.0
    %415 = vmatprep.subr.mxu0 0.0
    %416 = vmatpush1.msra.mxu0 0.0
    %417 = vmatprep.subr.mxu0 0.0
    %418 = vmatpush1.msra.mxu0 0.0
    %419 = vmatprep.subr.mxu0 0.0
    %420 = vmatpush1.msra.mxu0 0.0
    %421 = vmatprep.subr.mxu0 0.0
    %422 = vmatpush1.msra.mxu0 0.0
    %423 = vmatprep.subr.mxu0 0.0
    %424 = vmatpush1.msra.mxu0 0.0
    %425 = vmatprep.subr.mxu0 0.0
    %426 = vmatpush1.msra.mxu0 0.0
    %427 = vmatprep.subr.mxu0 0.0
    %428 = vmatpush1.msra.mxu0 0.0
    %429 = vmatprep.subr.mxu0 0.0
    %430 = vmatpush1.msra.mxu0 0.0
    %431 = vmatprep.subr.mxu0 0.0
    %432 = vmatpush1.msra.mxu0 0.0
    %433 = vmatprep.subr.mxu0 0.0
    %434 = vmatpush1.msra.mxu0 0.0
    %435 = vmatprep.subr.mxu0 0.0
    %436 = vmatpush1.msra.mxu0 0.0
    %437 = vmatprep.subr.mxu0 0.0
    %438 = vmatpush1.msra.mxu0 0.0
    %439 = vmatprep.subr.mxu0 0.0
    %440 = vmatpush1.msra.mxu0 0.0
    %441 = vmatprep.subr.mxu0 0.0
    %442 = vmatpush1.msra.mxu0 0.0
    %443 = vmatprep.subr.mxu0 0.0
    %444 = vmatpush1.msra.mxu0 0.0
    %445 = vmatprep.subr.mxu0 0.0
    %446 = vmatpush1.msra.mxu0 0.0
    %447 = vmatprep.subr.mxu0 0.0
    %448 = vmatpush1.msra.mxu0 0.0
    %449 = vmatprep.subr.mxu0 0.0
    %450 = vmatpush1.msra.mxu0 0.0
    %451 = vmatprep.subr.mxu0 0.0
    %452 = vmatpush1.msra.mxu0 0.0
    %453 = vmatprep.subr.mxu0 0.0
    %454 = vmatpush1.msra.mxu0 0.0
    %455 = vmatprep.subr.mxu0 0.0
    %456 = vmatpush1.msra.mxu0 0.0
    %457 = vmatprep.subr.mxu0 0.0
    %458 = vmatpush1.msra.mxu0 0.0
    %459 = vmatprep.subr.mxu0 0.0
    %460 = vmatpush1.msra.mxu0 0.0
    %461 = vmatprep.subr.mxu0 0.0
    %462 = vmatpush1.msra.mxu0 0.0
    %463 = vmatprep.subr.mxu0 0.0
    %464 = vmatpush1.msra.mxu0 0.0
    %465 = vmatprep.subr.mxu0 0.0
    %466 = vmatpush1.msra.mxu0 0.0
    %467 = vmatprep.subr.mxu0 0.0
    %468 = vmatpush1.msra.mxu0 0.0
    %469 = vmatprep.subr.mxu0 0.0
    %470 = vmatpush1.msra.mxu0 0.0
    %471 = vmatprep.subr.mxu0 0.0
    %472 = vmatpush1.msra.mxu0 0.0
    %473 = vmatprep.mubr.f32.mxu0 0.0
    %474 = vmatmul.mubr.f32.gmra.mrb[0].mxu0 %v398
    %v475 = vpop.f32.mrb[0].mxu0
    %v476 = vadd.f32 0.0, %v475
    %v477 = vpop.f32.mrb[0].mxu0
    %478 = vmatprep.mubr.f32.mxu0 0.0
    %479 = vmatmul.mubr.f32.gmra.mrb[0].mxu0 %v401
    %v480 = vpop.f32.mrb[0].mxu0
    %v481 = vadd.f32 0.0, %v480
    %v482 = vpop.f32.mrb[0].mxu0
    %483 = vmatprep.mubr.f32.mxu0 0.0
    %484 = vmatmul.mubr.f32.gmra.mrb[0].mxu0 %v404
    %v485 = vpop.f32.mrb[0].mxu0
    %v486 = vadd.f32 0.0, %v485
    %v487 = vpop.f32.mrb[0].mxu0
    %488 = vmatprep.mubr.f32.mxu0 0.0
    %489 = vmatmul.mubr.f32.gmra.mrb[0].mxu0 %v407
    %v490 = vpop.f32.mrb[0].mxu0
    %v491 = vadd.f32 0.0, %v490
    %v492 = vpop.f32.mrb[0].mxu0
    %493 = vdwg.mxu0
    %v494 = vadd.f32 %v392, %v476
    %v495 = vadd.f32 %v392, %v481
    %v496 = vadd.f32 %v392, %v486
    %v497 = vadd.f32 %v392, %v491
    %v498 = vmax.f32 %v494, 0.0
    %v499 = vmax.f32 %v495, 0.0
    %v500 = vmax.f32 %v496, 0.0
    %v501 = vmax.f32 %v497, 0.0
    %v502 = vld [vmem:[%s2 + $0xd0] sm:$0xff]
    %v503 = vld [vmem:[%s2 + $0xd8] sm:$0xff]
    %v504 = vld [vmem:[%s2 + $0xe0] sm:$0xff]
    %v505 = vld [vmem:[%s2 + $0xe8] sm:$0xff]
    %v506 = vld [vmem:[%s2 + $0xf0] sm:$0x1]
    %v507 = vlaneseq
    %v508 = vshrl.u32 %v507, 7
    %v509 = vsub.s32 0, %v508
    %v510 = vrot.slane %v506, %v509
    %vm511 = vcmask 261120
    %v513 = vsel %vm511, %v498, 0
    %v516 = vsel %vm511, %v499, 0
    %v519 = vsel %vm511, %v500, 0
    %v522 = vsel %vm511, %v501, 0
    %524 = vmatprep.subr.mxu0 0.0
    %525 = vmatpush1.msra.mxu0 %v502
    %526 = vmatprep.subr.mxu0 0.0
    %527 = vmatpush1.msra.mxu0 %v503
    %528 = vmatprep.subr.mxu0 0.0
    %529 = vmatpush1.msra.mxu0 %v504
    %530 = vmatprep.subr.mxu0 0.0
    %531 = vmatpush1.msra.mxu0 %v505
    %532 = vmatprep.subr.mxu0 0.0
    %533 = vmatpush1.msra.mxu0 0.0
    %534 = vmatprep.subr.mxu0 0.0
    %535 = vmatpush1.msra.mxu0 0.0
    %536 = vmatprep.subr.mxu0 0.0
    %537 = vmatpush1.msra.mxu0 0.0
    %538 = vmatprep.subr.mxu0 0.0
    %539 = vmatpush1.msra.mxu0 0.0
    %540 = vmatprep.subr.mxu0 0.0
    %541 = vmatpush1.msra.mxu0 0.0
    %542 = vmatprep.subr.mxu0 0.0
    %543 = vmatpush1.msra.mxu0 0.0
    %544 = vmatprep.subr.mxu0 0.0
    %545 = vmatpush1.msra.mxu0 0.0
    %546 = vmatprep.subr.mxu0 0.0
    %547 = vmatpush1.msra.mxu0 0.0
    %548 = vmatprep.subr.mxu0 0.0
    %549 = vmatpush1.msra.mxu0 0.0
    %550 = vmatprep.subr.mxu0 0.0
    %551 = vmatpush1.msra.mxu0 0.0
    %552 = vmatprep.subr.mxu0 0.0
    %553 = vmatpush1.msra.mxu0 0.0
    %554 = vmatprep.subr.mxu0 0.0
    %555 = vmatpush1.msra.mxu0 0.0
    %556 = vmatprep.subr.mxu0 0.0
    %557 = vmatpush1.msra.mxu0 0.0
    %558 = vmatprep.subr.mxu0 0.0
    %559 = vmatpush1.msra.mxu0 0.0
    %560 = vmatprep.subr.mxu0 0.0
    %561 = vmatpush1.msra.mxu0 0.0
    %562 = vmatprep.subr.mxu0 0.0
    %563 = vmatpush1.msra.mxu0 0.0
    %564 = vmatprep.subr.mxu0 0.0
    %565 = vmatpush1.msra.mxu0 0.0
    %566 = vmatprep.subr.mxu0 0.0
    %567 = vmatpush1.msra.mxu0 0.0
    %568 = vmatprep.subr.mxu0 0.0
    %569 = vmatpush1.msra.mxu0 0.0
    %570 = vmatprep.subr.mxu0 0.0
    %571 = vmatpush1.msra.mxu0 0.0
    %572 = vmatprep.subr.mxu0 0.0
    %573 = vmatpush1.msra.mxu0 0.0
    %574 = vmatprep.subr.mxu0 0.0
    %575 = vmatpush1.msra.mxu0 0.0
    %576 = vmatprep.subr.mxu0 0.0
    %577 = vmatpush1.msra.mxu0 0.0
    %578 = vmatprep.subr.mxu0 0.0
    %579 = vmatpush1.msra.mxu0 0.0
    %580 = vmatprep.subr.mxu0 0.0
    %581 = vmatpush1.msra.mxu0 0.0
    %582 = vmatprep.subr.mxu0 0.0
    %583 = vmatpush1.msra.mxu0 0.0
    %584 = vmatprep.subr.mxu0 0.0
    %585 = vmatpush1.msra.mxu0 0.0
    %586 = vmatprep.subr.mxu0 0.0
    %587 = vmatpush1.msra.mxu0 0.0
    %588 = vmatprep.mubr.f32.mxu0 0.0
    %589 = vmatmul.mubr.f32.gmra.mrb[0].mxu0 %v513
    %v590 = vpop.f32.mrb[0].mxu0
    %v591 = vadd.f32 %v510, %v590
    %v592 = vpop.f32.mrb[0].mxu0
    %593 = vmatprep.mubr.f32.mxu0 0.0
    %594 = vmatmul.mubr.f32.gmra.mrb[0].mxu0 %v516
    %v595 = vpop.f32.mrb[0].mxu0
    %v596 = vadd.f32 %v510, %v595
    %v597 = vpop.f32.mrb[0].mxu0
    %598 = vmatprep.mubr.f32.mxu0 0.0
    %599 = vmatmul.mubr.f32.gmra.mrb[0].mxu0 %v519
    %v600 = vpop.f32.mrb[0].mxu0
    %v601 = vadd.f32 %v510, %v600
    %v602 = vpop.f32.mrb[0].mxu0
    %603 = vmatprep.mubr.f32.mxu0 0.0
    %604 = vmatmul.mubr.f32.gmra.mrb[0].mxu0 %v522
    %v605 = vpop.f32.mrb[0].mxu0
    %v606 = vadd.f32 %v510, %v605
    %v607 = vpop.f32.mrb[0].mxu0
    %608 = vdwg.mxu0
    %v609 = vmax.f32 %v591, 0.0
    %v610 = vmax.f32 %v596, 0.0
    %v611 = vmax.f32 %v601, 0.0
    %v612 = vmax.f32 %v606, 0.0
    %v613 = vld [vmem:[%s2 + $0xf8] sm:$0xff]
    %v614 = vld [vmem:[%s2 + $0x100] sm:$0xff]
    %v615 = vld [vmem:[%s2 + $0x108] sm:$0xff]
    %v616 = vld [vmem:[%s2 + $0x110] sm:$0xff]
    %v617 = vld [vmem:[%s2 + $0x118] sm:$0x1]
    %v618 = vlaneseq
    %v619 = vshrl.u32 %v618, 7
    %v620 = vsub.s32 0, %v619
    %v621 = vrot.slane %v617, %v620
    %v623 = vsel %vm511, %v609, 0
    %v626 = vsel %vm511, %v610, 0
    %v629 = vsel %vm511, %v611, 0
    %v632 = vsel %vm511, %v612, 0
    %634 = vmatprep.subr.mxu0 0.0
    %635 = vmatpush1.msra.mxu0 %v613
    %636 = vmatprep.subr.mxu0 0.0
    %637 = vmatpush1.msra.mxu0 %v614
    %638 = vmatprep.subr.mxu0 0.0
    %639 = vmatpush1.msra.mxu0 %v615
    %640 = vmatprep.subr.mxu0 0.0
    %641 = vmatpush1.msra.mxu0 %v616
    %642 = vmatprep.subr.mxu0 0.0
    %643 = vmatpush1.msra.mxu0 0.0
    %644 = vmatprep.subr.mxu0 0.0
    %645 = vmatpush1.msra.mxu0 0.0
    %646 = vmatprep.subr.mxu0 0.0
    %647 = vmatpush1.msra.mxu0 0.0
    %648 = vmatprep.subr.mxu0 0.0
    %649 = vmatpush1.msra.mxu0 0.0
    %650 = vmatprep.subr.mxu0 0.0
    %651 = vmatpush1.msra.mxu0 0.0
    %652 = vmatprep.subr.mxu0 0.0
    %653 = vmatpush1.msra.mxu0 0.0
    %654 = vmatprep.subr.mxu0 0.0
    %655 = vmatpush1.msra.mxu0 0.0
    %656 = vmatprep.subr.mxu0 0.0
    %657 = vmatpush1.msra.mxu0 0.0
    %658 = vmatprep.subr.mxu0 0.0
    %659 = vmatpush1.msra.mxu0 0.0
    %660 = vmatprep.subr.mxu0 0.0
    %661 = vmatpush1.msra.mxu0 0.0
    %662 = vmatprep.subr.mxu0 0.0
    %663 = vmatpush1.msra.mxu0 0.0
    %664 = vmatprep.subr.mxu0 0.0
    %665 = vmatpush1.msra.mxu0 0.0
    %666 = vmatprep.subr.mxu0 0.0
    %667 = vmatpush1.msra.mxu0 0.0
    %668 = vmatprep.subr.mxu0 0.0
    %669 = vmatpush1.msra.mxu0 0.0
    %670 = vmatprep.subr.mxu0 0.0
    %671 = vmatpush1.msra.mxu0 0.0
    %672 = vmatprep.subr.mxu0 0.0
    %673 = vmatpush1.msra.mxu0 0.0
    %674 = vmatprep.subr.mxu0 0.0
    %675 = vmatpush1.msra.mxu0 0.0
    %676 = vmatprep.subr.mxu0 0.0
    %677 = vmatpush1.msra.mxu0 0.0
    %678 = vmatprep.subr.mxu0 0.0
    %679 = vmatpush1.msra.mxu0 0.0
    %680 = vmatprep.subr.mxu0 0.0
    %681 = vmatpush1.msra.mxu0 0.0
    %682 = vmatprep.subr.mxu0 0.0
    %683 = vmatpush1.msra.mxu0 0.0
    %684 = vmatprep.subr.mxu0 0.0
    %685 = vmatpush1.msra.mxu0 0.0
    %686 = vmatprep.subr.mxu0 0.0
    %687 = vmatpush1.msra.mxu0 0.0
    %688 = vmatprep.subr.mxu0 0.0
    %689 = vmatpush1.msra.mxu0 0.0
    %690 = vmatprep.subr.mxu0 0.0
    %691 = vmatpush1.msra.mxu0 0.0
    %692 = vmatprep.subr.mxu0 0.0
    %693 = vmatpush1.msra.mxu0 0.0
    %694 = vmatprep.subr.mxu0 0.0
    %695 = vmatpush1.msra.mxu0 0.0
    %696 = vmatprep.subr.mxu0 0.0
    %697 = vmatpush1.msra.mxu0 0.0
    %698 = vmatprep.mubr.f32.mxu0 0.0
    %699 = vmatmul.mubr.f32.gmra.mrb[0].mxu0 %v623
    %v700 = vpop.f32.mrb[0].mxu0
    %v701 = vadd.f32 %v621, %v700
    %v702 = vpop.f32.mrb[0].mxu0
    %703 = vmatprep.mubr.f32.mxu0 0.0
    %704 = vmatmul.mubr.f32.gmra.mrb[0].mxu0 %v626
    %v705 = vpop.f32.mrb[0].mxu0
    %v706 = vadd.f32 %v621, %v705
    %v707 = vpop.f32.mrb[0].mxu0
    %708 = vmatprep.mubr.f32.mxu0 0.0
    %709 = vmatmul.mubr.f32.gmra.mrb[0].mxu0 %v629
    %v710 = vpop.f32.mrb[0].mxu0
    %v711 = vadd.f32 %v621, %v710
    %v712 = vpop.f32.mrb[0].mxu0
    %713 = vmatprep.mubr.f32.mxu0 0.0
    %714 = vmatmul.mubr.f32.gmra.mrb[0].mxu0 %v632
    %v715 = vpop.f32.mrb[0].mxu0
    %v716 = vadd.f32 %v621, %v715
    %v717 = vpop.f32.mrb[0].mxu0
    %718 = vdwg.mxu0
    %v719 = vxor.u32 %v701, 2147483648
    %v720 = vmul.f32 %v719, 1.442695
    %v721 = vpow.pop %v720
    %v722 = vadd.f32 %v721, 1.0
    %v723 = vrcp.pop %v722
    %v724 = vmul.f32 1.0, %v723
    %725 = vst.msk [vmem:[#allocation2] sm:$0xff] %vm396, %v724
    %730 = vrot.lane.b32.xlu0 %v701, 16
    %v731 = vpop.permute.xlu0 %730
    %732 = vrot.lane.b32.xlu0 %v706, 16
    %v733 = vpop.permute.xlu0 %732
    %734 = vrot.lane.b32.xlu0 %v711, 16
    %v735 = vpop.permute.xlu0 %734
    %736 = vrot.lane.b32.xlu0 %v716, 16
    %v737 = vpop.permute.xlu0 %736
    %v742 = vmul.f32 %v20, %v731
    %v743 = vmul.f32 %v20, %v733
    %v744 = vmul.f32 %v20, %v735
    %v745 = vmul.f32 %v20, %v737
    %vm746 = vcmp.gt.f32.partialorder %v701, 20.0
    %vm747 = vcmp.gt.f32.partialorder %v706, 20.0
    %vm748 = vcmp.gt.f32.partialorder %v711, 20.0
    %vm749 = vcmp.gt.f32.partialorder %v716, 20.0
    %v750 = vmin.f32 %v701, 20.0
    %v751 = vmin.f32 %v706, 20.0
    %v752 = vmin.f32 %v711, 20.0
    %v753 = vmin.f32 %v716, 20.0
    %v754 = vmul.f32 %v750, 1.442695
    %v755 = vpow.pop %v754
    %v756 = vmul.f32 %v751, 1.442695
    %v757 = vpow.pop %v756
    %v758 = vmul.f32 %v752, 1.442695
    %v759 = vpow.pop %v758
    %v760 = vmul.f32 %v753, 1.442695
    %v761 = vpow.pop %v760
    %v762 = vadd.f32 %v755, 1.0
    %v763 = vlog2.pop %v762
    %v764 = vmul.f32 %v763, 0.6931472
    %v765 = vmul.f32 -0.5, %v755
    %v766 = vadd.f32 %v765, 1.0
    %v767 = vmul.f32 %v766, %v755
    %v768 = vand.u32 2147483647, %v755
    %vm769 = vcmp.lt.f32.partialorder %v768, 0.0004427343
    %v770 = vsel %vm769, %v767, %v764
    %v771 = vadd.f32 %v757, 1.0
    %v772 = vlog2.pop %v771
    %v773 = vmul.f32 %v772, 0.6931472
    %v774 = vmul.f32 -0.5, %v757
    %v775 = vadd.f32 %v774, 1.0
    %v776 = vmul.f32 %v775, %v757
    %v777 = vand.u32 2147483647, %v757
    %vm778 = vcmp.lt.f32.partialorder %v777, 0.0004427343
    %v779 = vsel %vm778, %v776, %v773
    %v780 = vadd.f32 %v759, 1.0
    %v781 = vlog2.pop %v780
    %v782 = vmul.f32 %v781, 0.6931472
    %v783 = vmul.f32 -0.5, %v759
    %v784 = vadd.f32 %v783, 1.0
    %v785 = vmul.f32 %v784, %v759
    %v786 = vand.u32 2147483647, %v759
    %vm787 = vcmp.lt.f32.partialorder %v786, 0.0004427343
    %v788 = vsel %vm787, %v785, %v782
    %v789 = vadd.f32 %v761, 1.0
    %v790 = vlog2.pop %v789
    %v791 = vmul.f32 %v790, 0.6931472
    %v792 = vmul.f32 -0.5, %v761
    %v793 = vadd.f32 %v792, 1.0
    %v794 = vmul.f32 %v793, %v761
    %v795 = vand.u32 2147483647, %v761
    %vm796 = vcmp.lt.f32.partialorder %v795, 0.0004427343
    %v797 = vsel %vm796, %v794, %v791
    %v798 = vsel %vm746, %v701, %v770
    %v799 = vsel %vm747, %v706, %v779
    %v800 = vsel %vm748, %v711, %v788
    %v801 = vsel %vm749, %v716, %v797
    %806 = vrot.lane.b32.xlu0 %v798, 16
    %v807 = vpop.permute.xlu0 %806
    %808 = vrot.lane.b32.xlu0 %v799, 16
    %v809 = vpop.permute.xlu0 %808
    %810 = vrot.lane.b32.xlu0 %v800, 16
    %v811 = vpop.permute.xlu0 %810
    %812 = vrot.lane.b32.xlu0 %v801, 16
    %v813 = vpop.permute.xlu0 %812
    %v818 = vsub.f32 %v742, %v807
    %v819 = vsub.f32 %v743, %v809
    %v820 = vsub.f32 %v744, %v811
    %v821 = vsub.f32 %v745, %v813
    %826 = vrot.lane.b32.xlu0 %v818, 112
    %v827 = vpop.permute.xlu0 %826
    %828 = vrot.lane.b32.xlu0 %v819, 112
    %v829 = vpop.permute.xlu0 %828
    %830 = vrot.lane.b32.xlu0 %v820, 112
    %v831 = vpop.permute.xlu0 %830
    %832 = vrot.lane.b32.xlu0 %v821, 112
    %v833 = vpop.permute.xlu0 %832
    %v838 = vsel %vm396, %v827, 0.0
    %v839 = vsel %vm396, %v829, 0.0
    %v840 = vadd.f32 %v838, %v839
    %v841 = vsel %vm396, %v831, 0.0
    %v842 = vadd.f32 %v840, %v841
    %v843 = vsel %vm396, %v833, 0.0
    %v844 = vadd.f32 %v842, %v843
    %845 = vadd.xlane.f32.xlu0 %v844
    %v846 = vpop.xlane.xlu0 %845
    %v847 = vrot.slane %v846, 4
    %v848 = vadd.f32 %v846, %v847
    %v849 = vrot.slane %v848, 2
    %v850 = vadd.f32 %v848, %v849
    %v851 = vrot.slane %v850, 1
    %v852 = vadd.f32 %v850, %v851
    %s853 = vtos %v852
    %v854 = vlog2.pop %v291
    %v855 = vmul.f32 %v854, 0.6931472
    %v856 = vadd.f32 %v855, 1.0
    %v857 = vmul.f32 %v275, %v275
    %859 = vrot.lane.b32.xlu0 %v857, 8
    %v860 = vpop.permute.xlu0 %859
    %v862 = vsub.f32 %v856, %v860
    %v863 = vsub.f32 %v862, %v291
    %865 = vrot.lane.b32.xlu0 %v863, 120
    %v866 = vpop.permute.xlu0 %865
    %v868 = vsel %vm396, %v866, 0.0
    %869 = vadd.xlane.f32.xlu0 %v868
    %v870 = vpop.xlane.xlu0 %869
    %v871 = vrot.slane %v870, 4
    %v872 = vadd.f32 %v870, %v871
    %v873 = vrot.slane %v872, 2
    %v874 = vadd.f32 %v872, %v873
    %v875 = vrot.slane %v874, 1
    %v876 = vadd.f32 %v874, %v875
    %s877 = vtos %v876
    %s878 = smul.f32 %s877, -0.0625
    %s879 = smul.f32 %s853, 0.03125
    %s880 = ssub.f32 %s879, %s878
    %s881 = scalar_lea.smem [#allocation6], 0
    %882 = sst [smem:[%s881]] %s878
    %s883 = ssub.f32 0.0, %s880
    %s884 = scalar_lea.smem [#allocation5], 0
    %885 = sst [smem:[%s884]] %s883
    // Predicated region
    $region14: #{forward.1} parent=1 // pred_check
      _
    $region15: #{forward.1} parent=1 // pred_check_branch
      %887 = sbr.rel (0) target = $region17
    $region16: #{forward.1} parent=1 // pred_region
      %s889 = ssub.s32 128, 128
      %890 = vsyncadd [#allocation3], %s889
      %s892 = sshll.u32 [#allocation2], 4
      %s893 = int_to_ptr.vmem [resolvable:$true] %s892
      %895 = dma.vmem_to_hbm [thread:$0]  %s893, 128, %s3, [#allocation3]
    $region17: #{forward.1} parent=1 // pred_fallthru
      _
    // Predicated region
    $region18: #{forward.1} parent=1 // pred_check
      _
    $region19: #{forward.1} parent=1 // pred_check_branch
      %897 = sbr.rel (0) target = $region21
    $region20: #{forward.1} parent=1 // pred_region
      %s899 = ssub.s32 16, 16
      %900 = vsyncadd [#allocation4], %s899
      %903 = dma.smem_to_hbm [#allocation5], 16, %s4, [#allocation4]
    $region21: #{forward.1} parent=1 // pred_fallthru
      _
    // Predicated region
    $region22: #{forward.1} parent=1 // pred_check
      _
    $region23: #{forward.1} parent=1 // pred_check_branch
      %905 = sbr.rel (0) target = $region25
    $region24: #{forward.1} parent=1 // pred_region
      %s907 = ssub.s32 16, 16
      %908 = vsyncadd [#allocation7], %s907
      %911 = dma.smem_to_hbm [#allocation6], 16, %s5, [#allocation7]
    $region25: #{forward.1} parent=1 // pred_fallthru
      _
    // Predicated region
    $region26: #{forward.1} parent=1 // pred_check
      _
    $region27: #{forward.1} parent=1 // pred_check_branch
      %913 = sbr.rel (0) target = $region29
    $region28: #{forward.1} parent=1 // pred_region
      %914 = dma.done [#allocation3], 128
    $region29: #{forward.1} parent=1 // pred_fallthru
      _
    // Predicated region
    $region30: #{forward.1} parent=1 // pred_check
      _
    $region31: #{forward.1} parent=1 // pred_check_branch
      %916 = sbr.rel (0) target = $region33
    $region32: #{forward.1} parent=1 // pred_region
      %917 = dma.done [#allocation4], 16
    $region33: #{forward.1} parent=1 // pred_fallthru
      _
    // Predicated region
    $region34: #{forward.1} parent=1 // pred_check
      _
    $region35: #{forward.1} parent=1 // pred_check_branch
      %919 = sbr.rel (0) target = $region37
    $region36: #{forward.1} parent=1 // pred_region
      %920 = dma.done [#allocation7], 16
    $region37: #{forward.1} parent=1 // pred_fallthru
      _
    %921 = sfence
    %922 = vsyncpa [#allocation3], 1
    %923 = vsyncpa [#allocation4], 1
    %924 = vsyncpa [#allocation7], 1

</llo_original>
